<compile_context>
chip_gen: v6e
topology: v6e:2x2x1
jax: 0.10.0
libtpu: 0.0.40
codegen_flags: <defaults>
</compile_context>

<pallas_src>
import functools

import jax
import jax.numpy as jnp
from jax.experimental import pallas as pl
from jax.experimental.pallas import tpu as pltpu

LANE = 128
_ROW_ALIGN = 8                        # one f32 vreg worth of sublanes
_CHUNK_ROWS = 512                     # inner compute chunk: 512x128 f32 = 256 KiB
_TARGET_TILE_BYTES = 8 * 1024 * 1024  # ~8 MiB per input per grid step
_VMEM_LIMIT = 48 * 1024 * 1024        # < 64 MiB physical VMEM on v7x


def _round_up(x, m):
    return -(-x // m) * m


def _hdr_loss_kernel(d_ref, t_ref, o_ref, *, eps, chunk, chunks_per_block,
                     num_blocks, core_start, tail_rows, overlap):
    """Accumulate per-core partial sum of (d - t)^2 / (d + eps)^2."""
    c = pl.program_id(0)   # TensorCore split ("parallel")
    i = pl.program_id(1)   # sequential reduction step within this core

    # Per-core resident accumulator (the output block itself).
    @pl.when(i == 0)
    def _():
        o_ref[...] = jnp.zeros_like(o_ref)

    def chunk_loss(off, valid_rows):
        # Load in storage dtype, upcast in-register (v5e VPU has no bf16 path).
        d = d_ref[pl.ds(off, chunk), :].astype(jnp.float32)
        t = t_ref[pl.ds(off, chunk), :].astype(jnp.float32)
        inv = pl.reciprocal(d + eps, approx=False)   # exact; see header note
        r = (d - t) * inv
        loss = r * r
        if valid_rows is not None:
            # Select (not multiply) so garbage in Pallas-padded rows can't
            # leak NaN/Inf into the sum.
            row = jax.lax.broadcasted_iota(jnp.int32, loss.shape, 0)
            loss = jnp.where(row < valid_rows, loss, 0.0)
        # (chunk, 128) -> (8, 128): vreg-wise VPU adds only; the expensive
        # cross-lane reduction is deferred to the wrapper (XLA scalar reduce).
        return loss.reshape(-1, _ROW_ALIGN, LANE).sum(axis=0)

    def block_sum(nchunks_full, rem_rows):
        acc = jnp.zeros((_ROW_ALIGN, LANE), jnp.float32)

        def body(j, a):
            off = pl.multiple_of(j * chunk, chunk)
            return a + chunk_loss(off, None)

        if nchunks_full > 0:
            acc = jax.lax.fori_loop(0, nchunks_full, body, acc)
        if rem_rows:
            acc = acc + chunk_loss(nchunks_full * chunk, rem_rows)
        return acc

    def accumulate_full():
        o_ref[...] += block_sum(chunks_per_block, 0)[None]

    def accumulate_tail():
        o_ref[...] += block_sum(tail_rows // chunk, tail_rows % chunk)[None]

    # Global block index along the row axis handled by this grid step.
    g = c * core_start + i

    if overlap:
        # Odd block count: core 1's first step re-reads a block already fully
        # handled by core 0; skip its contribution (DMA is in-range, harmless).
        active = jnp.logical_not(jnp.logical_and(c == 1, i == 0))
    else:
        active = None

    def run(acc_fn):
        if active is None:
            acc_fn()
        else:
            @pl.when(active)
            def _():
                acc_fn()

    if tail_rows is None:
        run(accumulate_full)
    else:
        is_tail = g == (num_blocks - 1)

        @pl.when(jnp.logical_not(is_tail))
        def _():
            run(accumulate_full)

        @pl.when(is_tail)
        def _():
            run(accumulate_tail)


def hdr_loss(denoised, target, eps=0.01, *, block_rows=None):
    """HDR loss: mean((d - t)^2 / (d + eps)^2) over all elements."""
    assert denoised.shape == target.shape
    n = int(denoised.size)
    assert n > 0

    # Keep f32 / bf16 / f16 storage dtype (bytes moved is the whole cost);
    # anything else falls back to f32 to match the reference semantics.
    native = (jnp.dtype(jnp.float32), jnp.dtype(jnp.bfloat16), jnp.dtype(jnp.float16))
    if denoised.dtype not in native:
        denoised = denoised.astype(jnp.float32)
    if target.dtype not in native:
        target = target.astype(jnp.float32)

    d = denoised.reshape(-1)
    t = target.reshape(-1)

    # Lane-remainder fallback ONLY: pad to a multiple of 128 when n % 128 != 0
    # (padded zeros contribute exactly 0).  Row/block raggedness is handled
    # with the in-kernel mask, so the common image-tensor case never pays an
    # extra HBM copy of both inputs.
    pad = (-n) % LANE
    if pad:
        d = jnp.pad(d, (0, pad))
        t = jnp.pad(t, (0, pad))
    rows = (n + pad) // LANE

    d = d.reshape(rows, LANE)
    t = t.reshape(rows, LANE)

    # dtype-aware tile size (~8 MiB per input per grid step), multiple of the
    # inner compute chunk so per-op VMEM temporaries stay small.
    if block_rows is None:
        itemsize = max(d.dtype.itemsize, t.dtype.itemsize)
        block_rows = _TARGET_TILE_BYTES // (LANE * itemsize)
    block_rows = max(_ROW_ALIGN, min(int(block_rows), _round_up(rows, _ROW_ALIGN)))
    block_rows = _round_up(block_rows, _ROW_ALIGN)
    chunk = min(_CHUNK_ROWS, block_rows)
    block_rows = _round_up(block_rows, chunk)

    num_blocks = -(-rows // block_rows)
    blocks_per_core = -(-num_blocks // 2)          # 2-way TensorCore split
    overlap = 2 * blocks_per_core - num_blocks     # 0 or 1 (static)
    core_start = num_blocks - blocks_per_core      # core 1's first block

    tail = rows - (num_blocks - 1) * block_rows
    tail_rows = None if tail == block_rows else int(tail)

    kernel = functools.partial(
        _hdr_loss_kernel, eps=float(eps), chunk=chunk,
        chunks_per_block=block_rows // chunk, num_blocks=num_blocks,
        core_start=core_start, tail_rows=tail_rows, overlap=overlap)

    in_map = lambda c, i: (c * core_start + i, 0)

    # 2 inputs x 2 pipeline buffers, plus headroom; explicit so v5e's 16 MiB
    # default doesn't block the big tiles, capped below v7x's 64 MiB physical.
    tile_bytes = block_rows * LANE * (d.dtype.itemsize + t.dtype.itemsize)
    vmem_limit = int(min(_VMEM_LIMIT, max(16 * 1024 * 1024, 2 * tile_bytes + (4 << 20))))

    partials = pl.pallas_call(
        kernel,
        out_shape=jax.ShapeDtypeStruct((2, _ROW_ALIGN, LANE), jnp.float32),
        grid_spec=pltpu.PrefetchScalarGridSpec(
            num_scalar_prefetch=0,
            grid=(2, blocks_per_core),
            in_specs=[
                pl.BlockSpec((block_rows, LANE), in_map),
                pl.BlockSpec((block_rows, LANE), in_map),
            ],
            out_specs=pl.BlockSpec((1, _ROW_ALIGN, LANE), lambda c, i: (c, 0, 0)),
        ),
        compiler_params=pltpu.CompilerParams(
            dimension_semantics=("parallel", "arbitrary"),
            vmem_limit_bytes=vmem_limit,
        ),
        cost_estimate=pl.CostEstimate(
            flops=6 * n,
            transcendentals=0,
            bytes_accessed=n * (d.dtype.itemsize + t.dtype.itemsize)
            + 2 * _ROW_ALIGN * LANE * 4,
        ),
    )(d, t)

    # Sum the two per-core (8, 128) partials and normalize in the wrapper.
    return jnp.sum(partials) / jnp.float32(n)


def hdr_loss_ref(denoised, target, eps=0.01):
    d = denoised.astype(jnp.float32)
    t = target.astype(jnp.float32)
    loss = (d - t) ** 2 / (d + eps) ** 2
    return jnp.mean(loss.reshape(-1))


if __name__ == "__main__":
    key = jax.random.PRNGKey(0)
    k1, k2, k3, k4 = jax.random.split(key, 4)

    # 1) Small NCHW f32 tensors consistent with the PyTorch module's forward.
    B, C, H, W = 2, 4, 16, 16
    denoised = jax.random.uniform(k1, (B, C, H, W), jnp.float32, 0.1, 2.0)
    target = denoised + 0.05 * jax.random.normal(k2, (B, C, H, W), jnp.float32)
    out = jax.block_until_ready(hdr_loss(denoised, target, eps=0.01))
    ref = hdr_loss_ref(denoised, target, eps=0.01)
    assert jnp.allclose(out, ref, rtol=1e-5, atol=1e-6), (out, ref)

    # 2) bf16 storage path (no wrapper cast; kernel upcasts in-register).
    out_bf16 = jax.block_until_ready(
        hdr_loss(denoised.astype(jnp.bfloat16), target.astype(jnp.bfloat16), eps=0.01))
    ref_bf16 = hdr_loss_ref(
        denoised.astype(jnp.bfloat16), target.astype(jnp.bfloat16), eps=0.01)
    assert jnp.allclose(out_bf16, ref_bf16, rtol=1e-4, atol=1e-6), (out_bf16, ref_bf16)

    # 3) Odd block count + ragged tail: 307200 elems = 2400 rows, block_rows=512
    #    -> 5 blocks (dual-core overlap skip) with a 352-row masked tail block.
    d2 = jax.random.uniform(k3, (4, 3, 128, 200), jnp.float32, 0.1, 2.0)
    t2 = d2 + 0.05 * jax.random.normal(k4, (4, 3, 128, 200), jnp.float32)
    out2 = jax.block_until_ready(hdr_loss(d2, t2, eps=0.01, block_rows=512))
    ref2 = hdr_loss_ref(d2, t2, eps=0.01)
    assert jnp.allclose(out2, ref2, rtol=1e-5, atol=1e-6), (out2, ref2)

    # 4) Even block count, no tail (clean 2-way core split): 2048 rows, 4 blocks.
    d3 = jax.random.uniform(k3, (2048, 128), jnp.float32, 0.1, 2.0)
    t3 = d3 + 0.05 * jax.random.normal(k4, (2048, 128), jnp.float32)
    out3 = jax.block_until_ready(hdr_loss(d3, t3, eps=0.01, block_rows=512))
    ref3 = hdr_loss_ref(d3, t3, eps=0.01)
    assert jnp.allclose(out3, ref3, rtol=1e-5, atol=1e-6), (out3, ref3)

    # 5) Non-128-multiple element count (lane-pad fallback + in-kernel row mask).
    d4 = jax.random.uniform(k1, (3, 5, 7, 11), jnp.float32, 0.1, 2.0)
    t4 = d4 + 0.05 * jax.random.normal(k2, (3, 5, 7, 11), jnp.float32)
    out4 = jax.block_until_ready(hdr_loss(d4, t4, eps=0.01))
    ref4 = hdr_loss_ref(d4, t4, eps=0.01)
    assert jnp.allclose(out4, ref4, rtol=1e-5, atol=1e-6), (out4, ref4)

    print("KERNEL_OK")
</pallas_src>

<mosaic_0001>
module attributes {stable_mosaic.version = 11 : i64} {
  func.func @_hdr_loss_kernel(%arg0: i32, %arg1: i32, %arg2: memref<16x128xf32, #tpu.memory_space<vmem>>, %arg3: memref<16x128xf32, #tpu.memory_space<vmem>>, %arg4: memref<1x8x128xf32, #tpu.memory_space<vmem>>) attributes {dimension_semantics = [#tpu.dimension_semantics<parallel>, #tpu.dimension_semantics<arbitrary>], iteration_bounds = array<i64: 2, 1>, scalar_prefetch = 0 : i64, scratch_operands = 0 : i64, tpu.core_type = #tpu.core_type<tc>, window_params = [{transform_indices = @transform_0, window_bounds = array<i64: 16, 128>}, {transform_indices = @transform_1, window_bounds = array<i64: 16, 128>}, {transform_indices = @transform_2, window_bounds = array<i64: 1, 8, 128>}]} {
    %c0_i32 = arith.constant 0 : i32
    %0 = arith.cmpi eq, %arg1, %c0_i32 : i32
    %1 = arith.extui %0 : i1 to i32
    %c0_i32_0 = arith.constant 0 : i32
    %2 = arith.cmpi ne, %1, %c0_i32_0 : i32
    scf.if %2 {
      %cst = arith.constant 0.000000e+00 : f32
      %9 = vector.broadcast %cst : f32 to vector<1x8x128xf32>
      %c0 = arith.constant 0 : index
      %c0_3 = arith.constant 0 : index
      %c0_4 = arith.constant 0 : index
      %10 = vector.load %arg4[%c0, %c0_3, %c0_4] : memref<1x8x128xf32, #tpu.memory_space<vmem>>, vector<1x8x128xf32>
      tpu.vector_store %arg4[%c0, %c0_3, %c0_4], %9 {strides = array<i32>} : memref<1x8x128xf32, #tpu.memory_space<vmem>>, vector<1x8x128xf32>,
    } else {
    }
    %c1_i32 = arith.constant 1 : i32
    %3 = arith.cmpi eq, %arg0, %c1_i32 : i32
    %c0_i32_1 = arith.constant 0 : i32
    %4 = arith.cmpi eq, %arg1, %c0_i32_1 : i32
    %5 = arith.andi %3, %4 : i1
    %true = arith.constant true
    %6 = arith.xori %5, %true : i1
    %7 = arith.extui %6 : i1 to i32
    %c0_i32_2 = arith.constant 0 : i32
    %8 = arith.cmpi ne, %7, %c0_i32_2 : i32
    scf.if %8 {
      %c0 = arith.constant 0 : index
      %c0_3 = arith.constant 0 : index
      %c0_4 = arith.constant 0 : index
      %9 = vector.load %arg4[%c0, %c0_3, %c0_4] : memref<1x8x128xf32, #tpu.memory_space<vmem>>, vector<1x8x128xf32>
      %cst = arith.constant 0.000000e+00 : f32
      %10 = vector.broadcast %cst : f32 to vector<8x128xf32>
      %c0_i32_5 = arith.constant 0 : i32
      %c16_i32 = arith.constant 16 : i32
      %11 = arith.muli %c0_i32_5, %c16_i32 : i32
      %12 = tpu.assume_multiple %11, 16 : i32
      %13 = arith.index_cast %12 : i32 to index
      %c0_6 = arith.constant 0 : index
      %14 = vector.load %arg2[%13, %c0_6] : memref<16x128xf32, #tpu.memory_space<vmem>>, vector<16x128xf32>
      %15 = arith.index_cast %12 : i32 to index
      %c0_7 = arith.constant 0 : index
      %16 = vector.load %arg3[%15, %c0_7] : memref<16x128xf32, #tpu.memory_space<vmem>>, vector<16x128xf32>
      %cst_8 = arith.constant 0.00999999977 : f32
      %17 = vector.broadcast %cst_8 : f32 to vector<16x128xf32>
      %18 = arith.addf %14, %17 : vector<16x128xf32>
      %19 = tpu.reciprocal %18 : vector<16x128xf32> -> vector<16x128xf32>
      %20 = arith.subf %14, %16 : vector<16x128xf32>
      %21 = arith.mulf %20, %19 : vector<16x128xf32>
      %22 = arith.mulf %21, %21 : vector<16x128xf32>
      %23 = vector.shape_cast %22 : vector<16x128xf32> to vector<2x8x128xf32>
      %cst_9 = arith.constant dense<0.000000e+00> : vector<8x128xf32>
      %24 = vector.multi_reduction <add>, %23, %cst_9 [0] : vector<2x8x128xf32> to vector<8x128xf32>
      %25 = arith.addf %10, %24 : vector<8x128xf32>
      %c1_i32_10 = arith.constant 1 : i32
      %26 = vector.shape_cast %25 : vector<8x128xf32> to vector<1x8x128xf32>
      %27 = arith.addf %9, %26 : vector<1x8x128xf32>
      %c0_11 = arith.constant 0 : index
      %c0_12 = arith.constant 0 : index
      %c0_13 = arith.constant 0 : index
      %28 = vector.load %arg4[%c0_11, %c0_12, %c0_13] : memref<1x8x128xf32, #tpu.memory_space<vmem>>, vector<1x8x128xf32>
      tpu.vector_store %arg4[%c0_11, %c0_12, %c0_13], %27 {strides = array<i32>} : memref<1x8x128xf32, #tpu.memory_space<vmem>>, vector<1x8x128xf32>,
    } else {
    }
    return
  }
  func.func @transform_0(%arg0: i32, %arg1: i32) -> (i32, i32) {
    %c0_i32 = arith.constant 0 : i32
    %0 = arith.muli %arg0, %c0_i32 : i32
    %1 = arith.addi %0, %arg1 : i32
    %c0_i32_0 = arith.constant 0 : i32
    %c0_i32_1 = arith.constant 0 : i32
    return %1, %c0_i32_0 : i32, i32
  }
  func.func @transform_1(%arg0: i32, %arg1: i32) -> (i32, i32) {
    %c0_i32 = arith.constant 0 : i32
    %0 = arith.muli %arg0, %c0_i32 : i32
    %1 = arith.addi %0, %arg1 : i32
    %c0_i32_0 = arith.constant 0 : i32
    %c0_i32_1 = arith.constant 0 : i32
    return %1, %c0_i32_0 : i32, i32
  }
  func.func @transform_2(%arg0: i32, %arg1: i32) -> (i32, i32, i32) {
    %c0_i32 = arith.constant 0 : i32
    %c0_i32_0 = arith.constant 0 : i32
    %c0_i32_1 = arith.constant 0 : i32
    return %arg0, %c0_i32, %c0_i32_0 : i32, i32, i32
  }
}

</mosaic_0001>

<llo_original>
// kernel: tpu_custom_call.1
$region0: #{tpu_custom_call.1}
  #allocation0 [shape = 'u32[]', space=smem, size = 0x4, offset = 0x4, fixed_abs, tag = 'smem constant byte address 0x4 - core index']
  #allocation1 [shape = 'u32[144,128]{1,0:T(1,128)}', space=vmem, size = 0x12000, scoped, tag = 'internal scratch']
  %s0 = inlined_call_operand.hbm [shape: f32[16,128], index: 0, kind: input, shape index: {}]
  %s1 = inlined_call_operand.hbm [shape: f32[16,128], index: 1, kind: input, shape index: {}]
  %s2 = inlined_call_operand.hbm [shape: f32[2,8,128], index: 2, kind: output, shape index: {}]
  %s3 = sld [smem:[#allocation0]]
  $region57: #{tpu_custom_call.1} parent=0
    _
  %s5 = ssub.s32 1, %s3
  %s6 = scalar_select 0, %s5, %s3
  $region1: #{tpu_custom_call.1} parent=0
    #allocation2 [shape = 'u8[8192]{0}', space=vmem, size = 0x2000, scoped, tag = 'input window, operand 0, single buffered']
    #allocation3 [shape = 's32[2]{0}', space=sflag, size = 0x8, scoped, tag = 'scoped memory for tpu_custom_call.1']
    #allocation4 [shape = 's32[2]{0}', space=sflag, size = 0x8, scoped, tag = 'scoped memory for tpu_custom_call.1']
    #allocation5 [shape = 'u8[8192]{0}', space=vmem, size = 0x2000, scoped, tag = 'input window, operand 1, single buffered']
    #allocation6 [shape = 's32[1]{0}', space=sflag, size = 0x4, scoped, tag = 'scoped memory for tpu_custom_call.1']
    #allocation7 [shape = 'u8[8192]{0}', space=vmem, size = 0x2000, scoped, tag = 'output window, operand 0']
    %7 = vsyncpa [#allocation3], 0
    %8 = vsyncpa [#allocation6], 0
    %9 = vsyncpa [#allocation4], 0
    %s10 = scalar_lea.sflag [#allocation4], 1
    %11 = vsyncpa %s10, 0
    loop: start=0, step=1, limit=4
    $region2: #{tpu_custom_call.1} parent=1 // loop_pre_header
      _
    $region3: #{tpu_custom_call.1} parent=1 // loop_header
      %s13 = sphi 0, %s17
      %p14 = scmp.ge.s32.totalorder %s13, 4
      %s20 = sphi 0, %s32
      %s21 = sphi 0, %s28
      %s22 = sphi 0, %s20
      %s23 = sphi 0, %s21
      %s24 = sphi 0, %s22
      %s25 = sphi 0, %s23
      %s35 = sphi 0, %s37
      %s38 = sphi 0, %s35
      %s39 = sphi 0, %s38
      %s55 = sphi 0, %s39
      %s61 = sphi 0, %s63
      %s64 = sphi 0, %s61
      %s65 = sphi 0, %s64
      %s81 = sphi 0, %s65
      %s87 = sphi 0, %s89
      %s90 = sphi 0, %s87
      %s91 = sphi 0, %s90
      %s107 = sphi 0, %s91
    $region4: #{tpu_custom_call.1} parent=1 // loop_header_branch
      %16 = sbr.rel (%p14) target = $region8
    $region5: #{tpu_custom_call.1} parent=1 // loop_body
      %s18 = ssub.s32 %s13, 1
      %s19 = ssub.s32 %s13, 2
      %s26 = sadd.s32 1, %s21
      %p27 = scmp.ge.s32.totalorder %s26, 1
      %s28 = scalar_select %p27, 0, %s26
      %s29 = sadd.s32 1, %s20
      %s30 = scalar_select %p27, %s29, %s20
      %p31 = scmp.ge.s32.totalorder %s30, 2
      %s32 = scalar_select %p31, 0, %s30
      %s33 = ssub.s32 %s21, %s28
      %p34 = scmp.eq.s32.totalorder %s33, 0
      %s36 = sadd.s32 %s35, 1
      %s37 = scalar_select %p34, %s35, %s36
      %p40 = pneg %p34
      %p41 = scmp.eq.s32.totalorder %s13, 1
      %p42 = por %p40, %p41
      %p43 = scmp.ne.s32.totalorder %s35, %s38
      %p44 = scmp.eq.s32.totalorder %s13, 0
      %p45 = por %p43, %p44
      %p46 = scmp.ne.s32.totalorder %s35, %s38
      %p47 = scmp.eq.s32.totalorder %s18, 1
      %p48 = por %p46, %p47
      %p49 = scmp.ne.s32.totalorder %s38, %s39
      %p50 = scmp.eq.s32.totalorder %s18, 0
      %p51 = por %p49, %p50
      %p52 = scmp.ne.s32.totalorder %s38, %s39
      %p53 = scmp.eq.s32.totalorder %s19, 1
      %p54 = por %p52, %p53
      %p56 = scmp.ne.s32.totalorder %s39, %s55
      %p57 = scmp.eq.s32.totalorder %s19, 0
      %p58 = por %p56, %p57
      %s59 = ssub.s32 %s21, %s28
      %p60 = scmp.eq.s32.totalorder %s59, 0
      %s62 = sadd.s32 %s61, 1
      %s63 = scalar_select %p60, %s61, %s62
      %p66 = pneg %p60
      %p67 = scmp.eq.s32.totalorder %s13, 1
      %p68 = por %p66, %p67
      %p69 = scmp.ne.s32.totalorder %s61, %s64
      %p70 = scmp.eq.s32.totalorder %s13, 0
      %p71 = por %p69, %p70
      %p72 = scmp.ne.s32.totalorder %s61, %s64
      %p73 = scmp.eq.s32.totalorder %s18, 1
      %p74 = por %p72, %p73
      %p75 = scmp.ne.s32.totalorder %s64, %s65
      %p76 = scmp.eq.s32.totalorder %s18, 0
      %p77 = por %p75, %p76
      %p78 = scmp.ne.s32.totalorder %s64, %s65
      %p79 = scmp.eq.s32.totalorder %s19, 1
      %p80 = por %p78, %p79
      %p82 = scmp.ne.s32.totalorder %s65, %s81
      %p83 = scmp.eq.s32.totalorder %s19, 0
      %p84 = por %p82, %p83
      %s85 = ssub.s32 %s20, %s32
      %p86 = scmp.eq.s32.totalorder %s85, 0
      %s88 = sadd.s32 %s87, 1
      %s89 = scalar_select %p86, %s87, %s88
      %p92 = pneg %p86
      %p93 = scmp.eq.s32.totalorder %s13, 1
      %p94 = por %p92, %p93
      %p95 = scmp.ne.s32.totalorder %s87, %s90
      %p96 = scmp.eq.s32.totalorder %s13, 0
      %p97 = por %p95, %p96
      %p98 = scmp.ne.s32.totalorder %s87, %s90
      %p99 = scmp.eq.s32.totalorder %s18, 1
      %p100 = por %p98, %p99
      %p101 = scmp.ne.s32.totalorder %s90, %s91
      %p102 = scmp.eq.s32.totalorder %s18, 0
      %p103 = por %p101, %p102
      %p104 = scmp.ne.s32.totalorder %s90, %s91
      %p105 = scmp.eq.s32.totalorder %s19, 1
      %p106 = por %p104, %p105
      %p108 = scmp.ne.s32.totalorder %s91, %s107
      %p109 = scmp.eq.s32.totalorder %s19, 0
      %p110 = por %p108, %p109
      %p111 = scmp.le.s32.totalorder 1, %s13
      %p112 = scmp.lt.s32.totalorder %s13, 3
      %p113 = pnand %p111, %p112
      %p114 = pneg %p113
      // Predicated region
      $region9: #{tpu_custom_call.1} parent=5 // pred_check
        _
      $region10: #{tpu_custom_call.1} parent=5 // pred_check_branch
        %116 = sbr.rel (%p113) target = $region12
      $region11: #{tpu_custom_call.1} parent=5 // pred_region
        %s117 = ssub.s32 %s13, 1
        // Predicated region
        $region13: #{tpu_custom_call.1} parent=11 // pred_check
          %p118 = pneg %p51
        $region14: #{tpu_custom_call.1} parent=11 // pred_check_branch
          %120 = sbr.rel (%p118) target = $region16
        $region15: #{tpu_custom_call.1} parent=11 // pred_region
          %s121 = smul.u32 2, %s23
          %s123 = ssub.s32 256, 256
          %124 = vsyncadd [#allocation3], %s123
          %s125 = smul.addr %s121, 128
          %s126 = scalar_lea.hbm %s0, %s125
          %s127 = sshll.u32 [#allocation2], 4
          %s128 = int_to_ptr.vmem [resolvable:$true] %s127
          %133 = dma.hbm_to_vmem [thread:$0]  %s126, 256, %s128, [#allocation3], 128, 128, 8
        $region16: #{tpu_custom_call.1} parent=11 // pred_fallthru
          _
        // Predicated region
        $region17: #{tpu_custom_call.1} parent=11 // pred_check
          %p134 = pneg %p77
        $region18: #{tpu_custom_call.1} parent=11 // pred_check_branch
          %136 = sbr.rel (%p134) target = $region20
        $region19: #{tpu_custom_call.1} parent=11 // pred_region
          %s137 = smul.u32 2, %s23
          %s139 = ssub.s32 256, 256
          %140 = vsyncadd [#allocation6], %s139
          %s141 = smul.addr %s137, 128
          %s142 = scalar_lea.hbm %s1, %s141
          %s143 = sshll.u32 [#allocation5], 4
          %s144 = int_to_ptr.vmem [resolvable:$true] %s143
          %149 = dma.hbm_to_vmem [thread:$0]  %s142, 256, %s144, [#allocation6], 128, 128, 8
        $region20: #{tpu_custom_call.1} parent=11 // pred_fallthru
          _
      $region12: #{tpu_custom_call.1} parent=5 // pred_fallthru
        _
      %p150 = scmp.lt.s32.totalorder %s13, 2
      // Predicated region
      $region21: #{tpu_custom_call.1} parent=5 // pred_check
        %p151 = pneg %p150
      $region22: #{tpu_custom_call.1} parent=5 // pred_check_branch
        %153 = sbr.rel (%p151) target = $region24
      $region23: #{tpu_custom_call.1} parent=5 // pred_region
        _
      $region24: #{tpu_custom_call.1} parent=5 // pred_fallthru
        _
      %p154 = scmp.le.s32.totalorder 1, %s13
      %p155 = scmp.lt.s32.totalorder %s13, 3
      %p156 = pnand %p154, %p155
      %p157 = pneg %p156
      // Predicated region
      $region25: #{tpu_custom_call.1} parent=5 // pred_check
        _
      $region26: #{tpu_custom_call.1} parent=5 // pred_check_branch
        %159 = sbr.rel (%p156) target = $region28
      $region27: #{tpu_custom_call.1} parent=5 // pred_region
        %s160 = ssub.s32 %s13, 1
        // Predicated region
        $region29: #{tpu_custom_call.1} parent=27 // pred_check
          %p161 = pneg %p51
        $region30: #{tpu_custom_call.1} parent=27 // pred_check_branch
          %163 = sbr.rel (%p161) target = $region32
        $region31: #{tpu_custom_call.1} parent=27 // pred_region
          %164 = dma.done [#allocation3], 256
        $region32: #{tpu_custom_call.1} parent=27 // pred_fallthru
          _
        // Predicated region
        $region33: #{tpu_custom_call.1} parent=27 // pred_check
          %p165 = pneg %p77
        $region34: #{tpu_custom_call.1} parent=27 // pred_check_branch
          %167 = sbr.rel (%p165) target = $region36
        $region35: #{tpu_custom_call.1} parent=27 // pred_region
          %168 = dma.done [#allocation6], 256
        $region36: #{tpu_custom_call.1} parent=27 // pred_fallthru
          _
        %p169 = pneg %p51
        %p170 = pneg %p48
        %p171 = pneg %p77
        %p172 = pneg %p74
        %p173 = pneg %p103
        %p174 = pneg %p100
        %s175 = sand.u32 %s90, 1
        %s176 = scalar_lea.sflag [#allocation4], %s175
        %s177 = sand.u32 %s90, 1
        %s178 = smul.addr %s177, 8
        %s179 = scalar_lea.vmem [#allocation7], %s178
        %s180 = smul.u32 2, %s23
        %s181 = smul.u32 2, %s23
        %p182 = scmp.eq.s32.totalorder %s23, 0
        // Predicated region
        $region37: #{tpu_custom_call.1} parent=27 // pred_check
          %p183 = pneg %p182
        $region38: #{tpu_custom_call.1} parent=27 // pred_check_branch
          %185 = sbr.rel (%p183) target = $region40
        $region39: #{tpu_custom_call.1} parent=27 // pred_region
          %186 = vst [vmem:[%s179] sm:$0xff] 0.0
        $region40: #{tpu_custom_call.1} parent=27 // pred_fallthru
          _
        %p187 = scmp.eq.s32.totalorder %s22, 1
        %p188 = pnand %p187, %p182
        %p189 = pneg %p188
        %p190 = pneg %p189
        // Predicated region
        $region41: #{tpu_custom_call.1} parent=27 // pred_check
          _
        $region42: #{tpu_custom_call.1} parent=27 // pred_check_branch
          %192 = sbr.rel (%p189) target = $region44
        $region43: #{tpu_custom_call.1} parent=27 // pred_region
          %v193 = vld [vmem:[%s179] sm:$0xff]
          %v194 = vld [vmem:[#allocation2] sm:$0xff]
          %v195 = vld [vmem:[#allocation2 + $0x8] sm:$0xff]
          %v196 = vld [vmem:[#allocation5] sm:$0xff]
          %v197 = vld [vmem:[#allocation5 + $0x8] sm:$0xff]
          %v198 = vadd.f32 %v194, 0.01
          %v199 = vadd.f32 %v195, 0.01
          %v200 = vrcp.pop %v198
          %v201 = vrcp.pop %v199
          %v202 = vsub.f32 %v194, %v196
          %v203 = vsub.f32 %v195, %v197
          %v204 = vmul.f32 %v202, %v200
          %v205 = vmul.f32 %v203, %v201
          %v206 = vmul.f32 %v204, %v204
          %v207 = vmul.f32 %v205, %v205
          %v208 = vadd.f32 %v206, %v207
          %v209 = vadd.f32 %v208, 0.0
          %v210 = vadd.f32 %v193, %v209
          %211 = vst [vmem:[%s179] sm:$0xff] %v210
        $region44: #{tpu_custom_call.1} parent=27 // pred_fallthru
          _
        %s212 = sand.u32 %s90, 1
        %s213 = scalar_lea.sflag [#allocation4], %s212
        %s214 = sand.u32 %s90, 1
        %s215 = smul.addr %s214, 8
        %s216 = scalar_lea.vmem [#allocation7], %s215
        // Predicated region
        $region45: #{tpu_custom_call.1} parent=27 // pred_check
          %p217 = pneg %p100
        $region46: #{tpu_custom_call.1} parent=27 // pred_check_branch
          %219 = sbr.rel (%p217) target = $region48
        $region47: #{tpu_custom_call.1} parent=27 // pred_region
          %s221 = ssub.s32 128, 128
          %222 = vsyncadd %s213, %s221
          %s223 = smul.addr %s22, 128
          %s224 = scalar_lea.hbm %s2, %s223
          %s226 = sshll.u32 %s216, 4
          %s227 = int_to_ptr.vmem [resolvable:$true] %s226
          %229 = dma.vmem_to_hbm [thread:$0]  %s227, 128, %s224, %s213
        $region48: #{tpu_custom_call.1} parent=27 // pred_fallthru
          _
      $region28: #{tpu_custom_call.1} parent=5 // pred_fallthru
        _
      %p230 = scmp.le.s32.totalorder 2, %s13
      // Predicated region
      $region49: #{tpu_custom_call.1} parent=5 // pred_check
        %p231 = pneg %p230
      $region50: #{tpu_custom_call.1} parent=5 // pred_check_branch
        %233 = sbr.rel (%p231) target = $region52
      $region51: #{tpu_custom_call.1} parent=5 // pred_region
        %s234 = ssub.s32 %s13, 2
        // Predicated region
        $region53: #{tpu_custom_call.1} parent=51 // pred_check
          %p235 = pneg %p106
        $region54: #{tpu_custom_call.1} parent=51 // pred_check_branch
          %237 = sbr.rel (%p235) target = $region56
        $region55: #{tpu_custom_call.1} parent=51 // pred_region
          %s238 = sand.u32 %s91, 1
          %s239 = scalar_lea.sflag [#allocation4], %s238
          %s240 = sand.u32 %s91, 1
          %s241 = smul.addr %s240, 8
          %s242 = scalar_lea.vmem [#allocation7], %s241
          %243 = dma.done %s239, 128
        $region56: #{tpu_custom_call.1} parent=51 // pred_fallthru
          _
      $region52: #{tpu_custom_call.1} parent=5 // pred_fallthru
        _
    $region6: #{tpu_custom_call.1} parent=1 // loop_footer
      %s17 = sadd.s32 1, %s13
    $region7: #{tpu_custom_call.1} parent=1 // loop_footer_branch
      %12 = sbr.rel target = $region3
    $region8: #{tpu_custom_call.1} parent=1 // loop_exit
      _
    %244 = vsyncpa [#allocation3], 1
    %s245 = scalar_lea.sflag [#allocation3], 1
    %246 = vsyncpa %s245, 1
    %247 = vsyncpa [#allocation6], 1
    %248 = vsyncpa [#allocation4], 1
    %s249 = scalar_lea.sflag [#allocation4], 1
    %250 = vsyncpa %s249, 1

</llo_original>
